<compile_context>
chip_gen: v7x
topology: tpu7x:2x2x1
jax: 0.10.0
libtpu: 0.0.40
codegen_flags: <defaults>
</compile_context>

<pallas_src>
import jax
import jax.numpy as jnp
from jax import lax
from jax.experimental import pallas as pl
from jax.experimental.pallas import tpu as pltpu


# ----------------------------------------------------------------------------
# Helpers
# ----------------------------------------------------------------------------
def _vmem_budget_bytes():
    """~75% of physical per-core VMEM (generation-aware), safe fallback."""
    try:
        cap = int(pltpu.get_tpu_info().vmem_capacity_bytes)
    except Exception:
        cap = 64 << 20            # conservative (v7x-sized) fallback
    return (cap * 3) // 4


def _round_down_mult(v, m):
    return max(m, (v // m) * m)


# ----------------------------------------------------------------------------
# Stage 1: adaLN modulation  shift, 1+scale = SiLU(c) @ W + b   (tiny, tiled)
# ----------------------------------------------------------------------------
def adaln_modulation_kernel(c_ref, w_shift_ref, w_scale_ref,
                            b_shift_ref, b_scale_ref,
                            shift_ref, scale1_ref):
    c = c_ref[...].astype(jnp.float32)                       # (N, H)
    c_silu = (c * jax.nn.sigmoid(c)).astype(w_shift_ref.dtype)
    shift = jnp.dot(c_silu, w_shift_ref[...],
                    preferred_element_type=jnp.float32)
    shift = shift + b_shift_ref[...].astype(jnp.float32)
    scale = jnp.dot(c_silu, w_scale_ref[...],
                    preferred_element_type=jnp.float32)
    scale = scale + b_scale_ref[...].astype(jnp.float32)
    shift_ref[...] = shift.astype(shift_ref.dtype)
    scale1_ref[...] = (scale + 1.0).astype(scale1_ref.dtype)  # hoisted 1+scale


# ----------------------------------------------------------------------------
# Stage 2: LayerNorm (no affine) -> modulate -> final Linear, tiled over tokens
# ----------------------------------------------------------------------------
def final_layer_kernel(x_ref, shift_ref, scale1_ref, wlin_ref, blin_ref, o_ref):
    x = x_ref[...].astype(jnp.float32)                       # (tT, H)
    inv_h = 1.0 / x.shape[-1]

    # ---- LayerNorm, two-pass (x - mean) variance, eps=1e-6, no affine ----
    mean = jnp.sum(x, axis=-1, keepdims=True) * inv_h
    d = x - mean
    var = jnp.sum(d * d, axis=-1, keepdims=True) * inv_h
    x_norm = d * lax.rsqrt(var + 1e-6)

    # ---- modulate: shift / (1+scale) precomputed in f32, broadcast over tT ----
    y = x_norm * scale1_ref[...] + shift_ref[...]             # (tT, H)

    # ---- final projection at the weight's dtype (bf16 weights -> bf16 MXU) ----
    out = jnp.dot(y.astype(wlin_ref.dtype), wlin_ref[...],
                  preferred_element_type=jnp.float32)         # (tT, O)
    out = out + blin_ref[...].astype(jnp.float32)
    o_ref[...] = out.astype(o_ref.dtype)


# ----------------------------------------------------------------------------
# Wrapper
# ----------------------------------------------------------------------------
def final_layer(x, c, w_mod, b_mod, w_lin, b_lin, *, max_token_tile=1024):
    """x: (N, T, H), c: (N, H). Weights in (in, out) layout.

    MXU precision follows the weight dtype; pass bf16 weights / bf16 x for the
    fast path (f32 accumulation is always used internally).
    """
    N, T, H = x.shape
    O = w_lin.shape[1]
    x_bytes = jnp.dtype(x.dtype).itemsize
    w_bytes = jnp.dtype(w_lin.dtype).itemsize
    budget = _vmem_budget_bytes()

    # ---------------- Stage 1: shift and (1+scale), column-tiled -----------
    # chunk(2, dim=1) is done on the weights so there is no in-kernel slice.
    w_shift, w_scale = w_mod[:, :H], w_mod[:, H:]
    b_shift = b_mod[:H].reshape(1, H)
    b_scale = b_mod[H:].reshape(1, H)

    tH = min(H, 512) if (H % 128 == 0) else H    # lane-aligned column tile
    g1 = pl.cdiv(H, tH)
    mod_bytes = jnp.dtype(w_mod.dtype).itemsize
    s1_need = (2 * N * H * jnp.dtype(c.dtype).itemsize       # c (db)
               + 2 * 2 * H * tH * mod_bytes                  # 2 weight tiles (db)
               + 2 * 2 * tH * mod_bytes                      # biases (db)
               + 2 * 2 * N * tH * 4                          # outputs (db)
               + (2 << 20))                                  # internal scratch
    s1_vmem = int(min(budget, max(s1_need, 8 << 20)))

    shift, scale1 = pl.pallas_call(
        adaln_modulation_kernel,
        out_shape=(jax.ShapeDtypeStruct((N, H), jnp.float32),
                   jax.ShapeDtypeStruct((N, H), jnp.float32)),
        grid_spec=pltpu.PrefetchScalarGridSpec(
            num_scalar_prefetch=0,
            grid=(g1,),
            in_specs=[
                pl.BlockSpec((N, H), lambda j: (0, 0)),      # c (resident)
                pl.BlockSpec((H, tH), lambda j: (0, j)),     # w_shift tile
                pl.BlockSpec((H, tH), lambda j: (0, j)),     # w_scale tile
                pl.BlockSpec((1, tH), lambda j: (0, j)),     # b_shift tile
                pl.BlockSpec((1, tH), lambda j: (0, j)),     # b_scale tile
            ],
            out_specs=[pl.BlockSpec((N, tH), lambda j: (0, j)),
                       pl.BlockSpec((N, tH), lambda j: (0, j))],
        ),
        compiler_params=pltpu.CompilerParams(
            dimension_semantics=("parallel",),
            vmem_limit_bytes=s1_vmem),
    )(c, w_shift, w_scale, b_shift, b_scale)

    shift3 = shift.reshape(N, 1, H)
    scale13 = scale1.reshape(N, 1, H)
    b_lin2 = b_lin.reshape(1, O)

    # ---------------- Stage 2: token tile from the real VMEM budget --------
    # Per-token cost: x tile (double-buffered) + out tile (double-buffered)
    # + ~4 f32 compute temps Mosaic materialises in internal scratch.
    fixed = 2 * (H * O + O) * w_bytes + 4 * H * 4 + (2 << 20)
    per_tok = 2 * H * x_bytes + 2 * O * x_bytes + 4 * H * 4
    tT = int(max(8, (budget - fixed) // per_tok))
    tT = min(tT, max_token_tile, T)
    if tT < T:
        tT = _round_down_mult(tT, 8)
    else:
        tT = T
    # Keep >= 2 token-grid steps when N == 1 so both v7x TensorCores get work.
    if N == 1 and T >= 16:
        half = ((-(-T // 2) + 7) // 8) * 8
        tT = min(tT, half)

    grid = (N, pl.cdiv(T, tT))
    s2_need = fixed + per_tok * tT + (4 << 20)
    s2_vmem = int(min(budget, max(s2_need, 16 << 20)))

    cost = pl.CostEstimate(
        flops=2 * N * T * H * O + 10 * N * T * H,
        transcendentals=N * T,
        bytes_accessed=N * T * (H + O) * x_bytes
                       + (H * O + O) * w_bytes
                       + 2 * N * H * 4,
    )

    out = pl.pallas_call(
        final_layer_kernel,
        out_shape=jax.ShapeDtypeStruct((N, T, O), x.dtype),
        grid_spec=pltpu.PrefetchScalarGridSpec(
            num_scalar_prefetch=0,
            grid=grid,
            in_specs=[
                pl.BlockSpec((pl.Squeezed(), tT, H), lambda n, t: (n, t, 0)),  # x
                pl.BlockSpec((pl.Squeezed(), 1, H), lambda n, t: (n, 0, 0)),   # shift
                pl.BlockSpec((pl.Squeezed(), 1, H), lambda n, t: (n, 0, 0)),   # 1+scale
                pl.BlockSpec((H, O), lambda n, t: (0, 0)),                     # w_lin (resident)
                pl.BlockSpec((1, O), lambda n, t: (0, 0)),                     # b_lin
            ],
            out_specs=pl.BlockSpec((pl.Squeezed(), tT, O),
                                   lambda n, t: (n, t, 0)),
        ),
        compiler_params=pltpu.CompilerParams(
            dimension_semantics=("parallel", "parallel"),
            vmem_limit_bytes=s2_vmem),
        cost_estimate=cost,
    )(x, shift3, scale13, w_lin, b_lin2)
    return out


# ----------------------------------------------------------------------------
# Pure-JAX reference (matches the PyTorch module, f32)
# ----------------------------------------------------------------------------
def final_layer_ref(x, c, w_mod, b_mod, w_lin, b_lin):
    H = x.shape[-1]
    x = x.astype(jnp.float32)
    c = c.astype(jnp.float32)
    w_mod = w_mod.astype(jnp.float32)
    b_mod = b_mod.astype(jnp.float32)
    w_lin = w_lin.astype(jnp.float32)
    b_lin = b_lin.astype(jnp.float32)
    c_silu = c * jax.nn.sigmoid(c)
    mod = c_silu @ w_mod + b_mod
    shift, scale = mod[:, :H], mod[:, H:]
    mean = jnp.mean(x, axis=-1, keepdims=True)
    var = jnp.mean((x - mean) ** 2, axis=-1, keepdims=True)
    x_norm = (x - mean) * lax.rsqrt(var + 1e-6)
    y = x_norm * (1.0 + scale[:, None, :]) + shift[:, None, :]
    return y @ w_lin + b_lin


if __name__ == "__main__":
    # Small shapes consistent with the module:
    N, T = 2, 8                 # batch, tokens
    hidden_size = 32
    patch_size = 2
    out_channels = 4
    O = patch_size * patch_size * out_channels   # 16

    key = jax.random.PRNGKey(0)
    kx, kc, k1, k2, k3, k4 = jax.random.split(key, 6)

    x = jax.random.normal(kx, (N, T, hidden_size), dtype=jnp.float32)
    c = jax.random.normal(kc, (N, hidden_size), dtype=jnp.float32)

    # Deterministic parameters, stored (in_features, out_features).
    w_mod = jax.random.normal(k1, (hidden_size, 2 * hidden_size), jnp.float32) * 0.02
    b_mod = jax.random.normal(k2, (2 * hidden_size,), jnp.float32) * 0.02
    w_lin = jax.random.normal(k3, (hidden_size, O), jnp.float32) * 0.02
    b_lin = jax.random.normal(k4, (O,), jnp.float32) * 0.02

    ref = final_layer_ref(x, c, w_mod, b_mod, w_lin, b_lin)

    # ---- f32 path (strict correctness check) ----
    out_f32 = jax.block_until_ready(final_layer(x, c, w_mod, b_mod, w_lin, b_lin))
    assert out_f32.shape == (N, T, O)
    assert jnp.allclose(out_f32, ref, atol=1e-4, rtol=1e-4), "f32 mismatch vs reference"

    # ---- bf16 fast path (bf16 x in HBM, bf16 MXU operands) ----
    out_bf16 = jax.block_until_ready(final_layer(
        x.astype(jnp.bfloat16), c.astype(jnp.bfloat16),
        w_mod.astype(jnp.bfloat16), b_mod.astype(jnp.bfloat16),
        w_lin.astype(jnp.bfloat16), b_lin.astype(jnp.bfloat16)))
    assert out_bf16.shape == (N, T, O)
    assert out_bf16.dtype == jnp.bfloat16
    assert jnp.allclose(out_bf16.astype(jnp.float32), ref, atol=5e-2, rtol=5e-2), \
        "bf16 mismatch vs reference"

    print("KERNEL_OK")
</pallas_src>

<mosaic_0001>
module attributes {stable_mosaic.version = 11 : i64} {
  func.func @adaln_modulation_kernel(%arg0: i32, %arg1: memref<2x32xf32, #tpu.memory_space<vmem>>, %arg2: memref<32x32xf32, #tpu.memory_space<vmem>>, %arg3: memref<32x32xf32, #tpu.memory_space<vmem>>, %arg4: memref<1x32xf32, #tpu.memory_space<vmem>>, %arg5: memref<1x32xf32, #tpu.memory_space<vmem>>, %arg6: memref<2x32xf32, #tpu.memory_space<vmem>>, %arg7: memref<2x32xf32, #tpu.memory_space<vmem>>) attributes {dimension_semantics = [#tpu.dimension_semantics<parallel>], iteration_bounds = array<i64: 1>, scalar_prefetch = 0 : i64, scratch_operands = 0 : i64, tpu.core_type = #tpu.core_type<tc>, window_params = [{pipeline_mode = #tpu.pipeline_mode<synchronous>, transform_indices = @transform_0, window_bounds = array<i64: 2, 32>}, {transform_indices = @transform_1, window_bounds = array<i64: 32, 32>}, {transform_indices = @transform_2, window_bounds = array<i64: 32, 32>}, {transform_indices = @transform_3, window_bounds = array<i64: 1, 32>}, {transform_indices = @transform_4, window_bounds = array<i64: 1, 32>}, {transform_indices = @transform_5, window_bounds = array<i64: 2, 32>}, {transform_indices = @transform_6, window_bounds = array<i64: 2, 32>}]} {
    %c0 = arith.constant 0 : index
    %c0_0 = arith.constant 0 : index
    %0 = vector.load %arg1[%c0, %c0_0] : memref<2x32xf32, #tpu.memory_space<vmem>>, vector<2x32xf32>
    %1 = arith.negf %0 : vector<2x32xf32>
    %2 = math.exp %1 : vector<2x32xf32>
    %cst = arith.constant 1.000000e+00 : f32
    %3 = vector.broadcast %cst : f32 to vector<2x32xf32>
    %4 = arith.addf %3, %2 : vector<2x32xf32>
    %5 = arith.divf %3, %4 : vector<2x32xf32>
    %6 = arith.mulf %0, %5 : vector<2x32xf32>
    %c0_1 = arith.constant 0 : index
    %c0_2 = arith.constant 0 : index
    %7 = vector.load %arg2[%c0_1, %c0_2] : memref<32x32xf32, #tpu.memory_space<vmem>>, vector<32x32xf32>
    %cst_3 = arith.constant dense<0.000000e+00> : vector<2x32xf32>
    %8 = tpu.matmul %6, %7, %cst_3 {dimension_numbers = #tpu.dot_dimension_numbers<[1], [0], [0], [1], [0, 0, 1, 1], [], []>} : vector<2x32xf32>, vector<32x32xf32>, vector<2x32xf32> -> vector<2x32xf32>
    %c0_4 = arith.constant 0 : index
    %c0_5 = arith.constant 0 : index
    %9 = vector.load %arg4[%c0_4, %c0_5] : memref<1x32xf32, #tpu.memory_space<vmem>>, vector<1x32xf32>
    %10 = vector.broadcast %9 : vector<1x32xf32> to vector<2x32xf32>
    %11 = arith.addf %8, %10 : vector<2x32xf32>
    %c0_6 = arith.constant 0 : index
    %c0_7 = arith.constant 0 : index
    %12 = vector.load %arg3[%c0_6, %c0_7] : memref<32x32xf32, #tpu.memory_space<vmem>>, vector<32x32xf32>
    %cst_8 = arith.constant dense<0.000000e+00> : vector<2x32xf32>
    %13 = tpu.matmul %6, %12, %cst_8 {dimension_numbers = #tpu.dot_dimension_numbers<[1], [0], [0], [1], [0, 0, 1, 1], [], []>} : vector<2x32xf32>, vector<32x32xf32>, vector<2x32xf32> -> vector<2x32xf32>
    %c0_9 = arith.constant 0 : index
    %c0_10 = arith.constant 0 : index
    %14 = vector.load %arg5[%c0_9, %c0_10] : memref<1x32xf32, #tpu.memory_space<vmem>>, vector<1x32xf32>
    %15 = vector.broadcast %14 : vector<1x32xf32> to vector<2x32xf32>
    %16 = arith.addf %13, %15 : vector<2x32xf32>
    %c0_11 = arith.constant 0 : index
    %c0_12 = arith.constant 0 : index
    %17 = vector.load %arg6[%c0_11, %c0_12] : memref<2x32xf32, #tpu.memory_space<vmem>>, vector<2x32xf32>
    tpu.vector_store %arg6[%c0_11, %c0_12], %11 {strides = array<i32>} : memref<2x32xf32, #tpu.memory_space<vmem>>, vector<2x32xf32>,
    %cst_13 = arith.constant 1.000000e+00 : f32
    %18 = vector.broadcast %cst_13 : f32 to vector<2x32xf32>
    %19 = arith.addf %16, %18 : vector<2x32xf32>
    %c0_14 = arith.constant 0 : index
    %c0_15 = arith.constant 0 : index
    %20 = vector.load %arg7[%c0_14, %c0_15] : memref<2x32xf32, #tpu.memory_space<vmem>>, vector<2x32xf32>
    tpu.vector_store %arg7[%c0_14, %c0_15], %19 {strides = array<i32>} : memref<2x32xf32, #tpu.memory_space<vmem>>, vector<2x32xf32>,
    return
  }
  func.func @transform_0(%arg0: i32) -> (i32, i32) {
    %c0_i32 = arith.constant 0 : i32
    %c0_i32_0 = arith.constant 0 : i32
    %c0_i32_1 = arith.constant 0 : i32
    return %c0_i32, %c0_i32_0 : i32, i32
  }
  func.func @transform_1(%arg0: i32) -> (i32, i32) {
    %c0_i32 = arith.constant 0 : i32
    %c0_i32_0 = arith.constant 0 : i32
    return %c0_i32, %arg0 : i32, i32
  }
  func.func @transform_2(%arg0: i32) -> (i32, i32) {
    %c0_i32 = arith.constant 0 : i32
    %c0_i32_0 = arith.constant 0 : i32
    return %c0_i32, %arg0 : i32, i32
  }
  func.func @transform_3(%arg0: i32) -> (i32, i32) {
    %c0_i32 = arith.constant 0 : i32
    %c0_i32_0 = arith.constant 0 : i32
    return %c0_i32, %arg0 : i32, i32
  }
  func.func @transform_4(%arg0: i32) -> (i32, i32) {
    %c0_i32 = arith.constant 0 : i32
    %c0_i32_0 = arith.constant 0 : i32
    return %c0_i32, %arg0 : i32, i32
  }
  func.func @transform_5(%arg0: i32) -> (i32, i32) {
    %c0_i32 = arith.constant 0 : i32
    %c0_i32_0 = arith.constant 0 : i32
    return %c0_i32, %arg0 : i32, i32
  }
  func.func @transform_6(%arg0: i32) -> (i32, i32) {
    %c0_i32 = arith.constant 0 : i32
    %c0_i32_0 = arith.constant 0 : i32
    return %c0_i32, %arg0 : i32, i32
  }
}

</mosaic_0001>

<llo_original>
// kernel: tpu_custom_call.1
$region0: #{tpu_custom_call.1}
  #allocation0 [shape = 'u32[]', space=smem, size = 0x4, offset = 0x4, fixed_abs, tag = 'smem constant byte address 0x4 - core index']
  #allocation1 [shape = 'u32[144,128]{1,0:T(1,128)}', space=vmem, size = 0x12000, scoped, tag = 'internal scratch']
  %s0 = inlined_call_operand.hbm [shape: f32[2,32], index: 0, kind: input, shape index: {}]
  %s1 = inlined_call_operand.hbm [shape: f32[32,32], index: 1, kind: input, shape index: {}]
  %s2 = inlined_call_operand.hbm [shape: f32[32,32], index: 2, kind: input, shape index: {}]
  %s3 = inlined_call_operand.vmem [shape: f32[1,32], index: 3, kind: input, shape index: {}]
  %s4 = inlined_call_operand.vmem [shape: f32[1,32], index: 4, kind: input, shape index: {}]
  %s5 = inlined_call_operand.hbm [shape: f32[2,32], index: 5, kind: output, shape index: {0}]
  %s6 = inlined_call_operand.hbm [shape: f32[2,32], index: 6, kind: output, shape index: {1}]
  %7 = xla_tuple %s5, %s6
  %s8 = sld [smem:[#allocation0]]
  $region50: #{tpu_custom_call.1} parent=0
    _
  %s10 = ssub.s32 1, %s8
  %s11 = scalar_select 0, %s10, %s8
  $region1: #{tpu_custom_call.1} parent=0
    #allocation2 [shape = 'u8[1024]{0}', space=vmem, size = 0x400, scoped, tag = 'input window, operand 0, single buffered']
    #allocation3 [shape = 's32[1]{0}', space=sflag, size = 0x4, scoped, tag = 'scoped memory for tpu_custom_call.1']
    #allocation4 [shape = 's32[1]{0}', space=sflag, size = 0x4, scoped, tag = 'scoped memory for tpu_custom_call.1']
    #allocation5 [shape = 'u8[16384]{0}', space=vmem, size = 0x4000, scoped, tag = 'input window, operand 1, single buffered']
    #allocation6 [shape = 's32[1]{0}', space=sflag, size = 0x4, scoped, tag = 'scoped memory for tpu_custom_call.1']
    #allocation7 [shape = 'u8[16384]{0}', space=vmem, size = 0x4000, scoped, tag = 'input window, operand 2, single buffered']
    #allocation8 [shape = 'u8[1024]{0}', space=vmem, size = 0x400, scoped, tag = 'output window, operand 0, single buffered']
    #allocation9 [shape = 'u8[1024]{0}', space=vmem, size = 0x400, scoped, tag = 'output window, operand 1, single buffered']
    #allocation10 [shape = 's32[1]{0}', space=sflag, size = 0x4, scoped, tag = 'scoped memory for tpu_custom_call.1']
    %12 = vsyncpa [#allocation3], 0
    %13 = vsyncpa [#allocation6], 0
    %14 = vsyncpa [#allocation4], 0
    %15 = vsyncpa [#allocation10], 0
    // Predicated region
    $region2: #{tpu_custom_call.1} parent=1 // pred_check
      _
    $region3: #{tpu_custom_call.1} parent=1 // pred_check_branch
      %17 = sbr.rel (0) target = $region5
    $region4: #{tpu_custom_call.1} parent=1 // pred_region
      %s19 = ssub.s32 32, 32
      %20 = vsyncadd [#allocation3], %s19
      %s22 = sshll.u32 [#allocation2], 4
      %s23 = int_to_ptr.vmem [resolvable:$true] %s22
      %25 = dma.hbm_to_vmem [thread:$0]  %s0, 32, %s23, [#allocation3]
    $region5: #{tpu_custom_call.1} parent=1 // pred_fallthru
      _
    // Predicated region
    $region6: #{tpu_custom_call.1} parent=1 // pred_check
      _
    $region7: #{tpu_custom_call.1} parent=1 // pred_check_branch
      %27 = sbr.rel (0) target = $region9
    $region8: #{tpu_custom_call.1} parent=1 // pred_region
      %s29 = ssub.s32 512, 512
      %30 = vsyncadd [#allocation6], %s29
      %s31 = sshll.u32 [#allocation5], 4
      %s32 = int_to_ptr.vmem [resolvable:$true] %s31
      %37 = dma.hbm_to_vmem [thread:$0]  %s1, 512, %s32, [#allocation6], 128, 128, 8
    $region9: #{tpu_custom_call.1} parent=1 // pred_fallthru
      _
    // Predicated region
    $region10: #{tpu_custom_call.1} parent=1 // pred_check
      _
    $region11: #{tpu_custom_call.1} parent=1 // pred_check_branch
      %39 = sbr.rel (0) target = $region13
    $region12: #{tpu_custom_call.1} parent=1 // pred_region
      %s41 = ssub.s32 512, 512
      %42 = vsyncadd [#allocation6], %s41
      %s43 = sshll.u32 [#allocation7], 4
      %s44 = int_to_ptr.vmem [resolvable:$true] %s43
      %49 = dma.hbm_to_vmem [thread:$0]  %s2, 512, %s44, [#allocation6], 128, 128, 8
    $region13: #{tpu_custom_call.1} parent=1 // pred_fallthru
      _
    // Predicated region
    $region14: #{tpu_custom_call.1} parent=1 // pred_check
      _
    $region15: #{tpu_custom_call.1} parent=1 // pred_check_branch
      %51 = sbr.rel (0) target = $region17
    $region16: #{tpu_custom_call.1} parent=1 // pred_region
      _
    $region17: #{tpu_custom_call.1} parent=1 // pred_fallthru
      _
    // Predicated region
    $region18: #{tpu_custom_call.1} parent=1 // pred_check
      _
    $region19: #{tpu_custom_call.1} parent=1 // pred_check_branch
      %53 = sbr.rel (0) target = $region21
    $region20: #{tpu_custom_call.1} parent=1 // pred_region
      _
    $region21: #{tpu_custom_call.1} parent=1 // pred_fallthru
      _
    // Predicated region
    $region22: #{tpu_custom_call.1} parent=1 // pred_check
      _
    $region23: #{tpu_custom_call.1} parent=1 // pred_check_branch
      %55 = sbr.rel (0) target = $region25
    $region24: #{tpu_custom_call.1} parent=1 // pred_region
      %56 = dma.done [#allocation3], 32
    $region25: #{tpu_custom_call.1} parent=1 // pred_fallthru
      _
    // Predicated region
    $region26: #{tpu_custom_call.1} parent=1 // pred_check
      _
    $region27: #{tpu_custom_call.1} parent=1 // pred_check_branch
      %58 = sbr.rel (0) target = $region29
    $region28: #{tpu_custom_call.1} parent=1 // pred_region
      %59 = dma.done [#allocation6], 512
    $region29: #{tpu_custom_call.1} parent=1 // pred_fallthru
      _
    // Predicated region
    $region30: #{tpu_custom_call.1} parent=1 // pred_check
      _
    $region31: #{tpu_custom_call.1} parent=1 // pred_check_branch
      %61 = sbr.rel (0) target = $region33
    $region32: #{tpu_custom_call.1} parent=1 // pred_region
      %62 = dma.done [#allocation6], 512
    $region33: #{tpu_custom_call.1} parent=1 // pred_fallthru
      _
    %v63 = vld [vmem:[#allocation2] sm:$0x3]
    %v64 = vxor.u32 %v63, 2147483648
    %v65 = vmul.f32 %v64, 1.442695
    %v66 = vpow.pop %v65
    %v67 = vadd.f32 %v66, 1.0
    %v68 = vrcp.pop %v67
    %v69 = vmul.f32 1.0, %v68
    %v70 = vmul.f32 %v63, %v69
    %v71 = vld [vmem:[#allocation5] sm:$0xff]
    %v72 = vld [vmem:[#allocation5 + $0x8] sm:$0xff]
    %v73 = vld [vmem:[#allocation5 + $0x10] sm:$0xff]
    %v74 = vld [vmem:[#allocation5 + $0x18] sm:$0xff]
    %v75 = vld [vmem:[%s3] sm:$0x1]
    %v77 = vlaneseq
    %v78 = vshrl.u32 %v77, 7
    %v79 = vsub.s32 0, %v78
    %v80 = vrot.slane %v75, %v79
    %vm82 = vcmask 261120
    %v84 = vsel %vm82, %v70, 0
    %86 = vmatprep.subr.mxu0 0.0
    %87 = vmatpush1.msra.mxu0 %v71
    %88 = vmatprep.subr.mxu0 0.0
    %89 = vmatpush1.msra.mxu0 %v72
    %90 = vmatprep.subr.mxu0 0.0
    %91 = vmatpush1.msra.mxu0 %v73
    %92 = vmatprep.subr.mxu0 0.0
    %93 = vmatpush1.msra.mxu0 %v74
    %94 = vmatprep.subr.mxu0 0.0
    %95 = vmatpush1.msra.mxu0 0.0
    %96 = vmatprep.subr.mxu0 0.0
    %97 = vmatpush1.msra.mxu0 0.0
    %98 = vmatprep.subr.mxu0 0.0
    %99 = vmatpush1.msra.mxu0 0.0
    %100 = vmatprep.subr.mxu0 0.0
    %101 = vmatpush1.msra.mxu0 0.0
    %102 = vmatprep.subr.mxu0 0.0
    %103 = vmatpush1.msra.mxu0 0.0
    %104 = vmatprep.subr.mxu0 0.0
    %105 = vmatpush1.msra.mxu0 0.0
    %106 = vmatprep.subr.mxu0 0.0
    %107 = vmatpush1.msra.mxu0 0.0
    %108 = vmatprep.subr.mxu0 0.0
    %109 = vmatpush1.msra.mxu0 0.0
    %110 = vmatprep.subr.mxu0 0.0
    %111 = vmatpush1.msra.mxu0 0.0
    %112 = vmatprep.subr.mxu0 0.0
    %113 = vmatpush1.msra.mxu0 0.0
    %114 = vmatprep.subr.mxu0 0.0
    %115 = vmatpush1.msra.mxu0 0.0
    %116 = vmatprep.subr.mxu0 0.0
    %117 = vmatpush1.msra.mxu0 0.0
    %118 = vmatprep.subr.mxu0 0.0
    %119 = vmatpush1.msra.mxu0 0.0
    %120 = vmatprep.subr.mxu0 0.0
    %121 = vmatpush1.msra.mxu0 0.0
    %122 = vmatprep.subr.mxu0 0.0
    %123 = vmatpush1.msra.mxu0 0.0
    %124 = vmatprep.subr.mxu0 0.0
    %125 = vmatpush1.msra.mxu0 0.0
    %126 = vmatprep.subr.mxu0 0.0
    %127 = vmatpush1.msra.mxu0 0.0
    %128 = vmatprep.subr.mxu0 0.0
    %129 = vmatpush1.msra.mxu0 0.0
    %130 = vmatprep.subr.mxu0 0.0
    %131 = vmatpush1.msra.mxu0 0.0
    %132 = vmatprep.subr.mxu0 0.0
    %133 = vmatpush1.msra.mxu0 0.0
    %134 = vmatprep.subr.mxu0 0.0
    %135 = vmatpush1.msra.mxu0 0.0
    %136 = vmatprep.subr.mxu0 0.0
    %137 = vmatpush1.msra.mxu0 0.0
    %138 = vmatprep.subr.mxu0 0.0
    %139 = vmatpush1.msra.mxu0 0.0
    %140 = vmatprep.subr.mxu0 0.0
    %141 = vmatpush1.msra.mxu0 0.0
    %142 = vmatprep.subr.mxu0 0.0
    %143 = vmatpush1.msra.mxu0 0.0
    %144 = vmatprep.subr.mxu0 0.0
    %145 = vmatpush1.msra.mxu0 0.0
    %146 = vmatprep.subr.mxu0 0.0
    %147 = vmatpush1.msra.mxu0 0.0
    %148 = vmatprep.subr.mxu0 0.0
    %149 = vmatpush1.msra.mxu0 0.0
    %150 = vmatprep.mubr.f32.mxu0 0.0
    %151 = vmatmul.mubr.f32.gmra.mrb[0].mxu0 %v84
    %v152 = vpop.f32.mrb[0].mxu0
    %v153 = vadd.f32 %v80, %v152
    %v154 = vpop.f32.mrb[0].mxu0
    %155 = vdwg.mxu0
    %v156 = vld [vmem:[#allocation7] sm:$0xff]
    %v157 = vld [vmem:[#allocation7 + $0x8] sm:$0xff]
    %v158 = vld [vmem:[#allocation7 + $0x10] sm:$0xff]
    %v159 = vld [vmem:[#allocation7 + $0x18] sm:$0xff]
    %v160 = vld [vmem:[%s4] sm:$0x1]
    %v162 = vlaneseq
    %v163 = vshrl.u32 %v162, 7
    %v164 = vsub.s32 0, %v163
    %v165 = vrot.slane %v160, %v164
    %167 = vmatprep.subr.mxu0 0.0
    %168 = vmatpush1.msra.mxu0 %v156
    %169 = vmatprep.subr.mxu0 0.0
    %170 = vmatpush1.msra.mxu0 %v157
    %171 = vmatprep.subr.mxu0 0.0
    %172 = vmatpush1.msra.mxu0 %v158
    %173 = vmatprep.subr.mxu0 0.0
    %174 = vmatpush1.msra.mxu0 %v159
    %175 = vmatprep.subr.mxu0 0.0
    %176 = vmatpush1.msra.mxu0 0.0
    %177 = vmatprep.subr.mxu0 0.0
    %178 = vmatpush1.msra.mxu0 0.0
    %179 = vmatprep.subr.mxu0 0.0
    %180 = vmatpush1.msra.mxu0 0.0
    %181 = vmatprep.subr.mxu0 0.0
    %182 = vmatpush1.msra.mxu0 0.0
    %183 = vmatprep.subr.mxu0 0.0
    %184 = vmatpush1.msra.mxu0 0.0
    %185 = vmatprep.subr.mxu0 0.0
    %186 = vmatpush1.msra.mxu0 0.0
    %187 = vmatprep.subr.mxu0 0.0
    %188 = vmatpush1.msra.mxu0 0.0
    %189 = vmatprep.subr.mxu0 0.0
    %190 = vmatpush1.msra.mxu0 0.0
    %191 = vmatprep.subr.mxu0 0.0
    %192 = vmatpush1.msra.mxu0 0.0
    %193 = vmatprep.subr.mxu0 0.0
    %194 = vmatpush1.msra.mxu0 0.0
    %195 = vmatprep.subr.mxu0 0.0
    %196 = vmatpush1.msra.mxu0 0.0
    %197 = vmatprep.subr.mxu0 0.0
    %198 = vmatpush1.msra.mxu0 0.0
    %199 = vmatprep.subr.mxu0 0.0
    %200 = vmatpush1.msra.mxu0 0.0
    %201 = vmatprep.subr.mxu0 0.0
    %202 = vmatpush1.msra.mxu0 0.0
    %203 = vmatprep.subr.mxu0 0.0
    %204 = vmatpush1.msra.mxu0 0.0
    %205 = vmatprep.subr.mxu0 0.0
    %206 = vmatpush1.msra.mxu0 0.0
    %207 = vmatprep.subr.mxu0 0.0
    %208 = vmatpush1.msra.mxu0 0.0
    %209 = vmatprep.subr.mxu0 0.0
    %210 = vmatpush1.msra.mxu0 0.0
    %211 = vmatprep.subr.mxu0 0.0
    %212 = vmatpush1.msra.mxu0 0.0
    %213 = vmatprep.subr.mxu0 0.0
    %214 = vmatpush1.msra.mxu0 0.0
    %215 = vmatprep.subr.mxu0 0.0
    %216 = vmatpush1.msra.mxu0 0.0
    %217 = vmatprep.subr.mxu0 0.0
    %218 = vmatpush1.msra.mxu0 0.0
    %219 = vmatprep.subr.mxu0 0.0
    %220 = vmatpush1.msra.mxu0 0.0
    %221 = vmatprep.subr.mxu0 0.0
    %222 = vmatpush1.msra.mxu0 0.0
    %223 = vmatprep.subr.mxu0 0.0
    %224 = vmatpush1.msra.mxu0 0.0
    %225 = vmatprep.subr.mxu0 0.0
    %226 = vmatpush1.msra.mxu0 0.0
    %227 = vmatprep.subr.mxu0 0.0
    %228 = vmatpush1.msra.mxu0 0.0
    %229 = vmatprep.subr.mxu0 0.0
    %230 = vmatpush1.msra.mxu0 0.0
    %231 = vmatprep.mubr.f32.mxu0 0.0
    %232 = vmatmul.mubr.f32.gmra.mrb[0].mxu0 %v84
    %v233 = vpop.f32.mrb[0].mxu0
    %v234 = vadd.f32 %v165, %v233
    %v235 = vpop.f32.mrb[0].mxu0
    %236 = vdwg.mxu0
    %vm237 = vcmask 254976
    %238 = vst.msk [vmem:[#allocation8] sm:$0x3] %vm237, %v153
    %v239 = vadd.f32 %v234, 1.0
    %240 = vst.msk [vmem:[#allocation9] sm:$0x3] %vm237, %v239
    // Predicated region
    $region34: #{tpu_custom_call.1} parent=1 // pred_check
      _
    $region35: #{tpu_custom_call.1} parent=1 // pred_check_branch
      %242 = sbr.rel (0) target = $region37
    $region36: #{tpu_custom_call.1} parent=1 // pred_region
      %s244 = ssub.s32 32, 32
      %245 = vsyncadd [#allocation4], %s244
      %s247 = sshll.u32 [#allocation8], 4
      %s248 = int_to_ptr.vmem [resolvable:$true] %s247
      %250 = dma.vmem_to_hbm [thread:$0]  %s248, 32, %s5, [#allocation4]
    $region37: #{tpu_custom_call.1} parent=1 // pred_fallthru
      _
    // Predicated region
    $region38: #{tpu_custom_call.1} parent=1 // pred_check
      _
    $region39: #{tpu_custom_call.1} parent=1 // pred_check_branch
      %252 = sbr.rel (0) target = $region41
    $region40: #{tpu_custom_call.1} parent=1 // pred_region
      %s254 = ssub.s32 32, 32
      %255 = vsyncadd [#allocation10], %s254
      %s257 = sshll.u32 [#allocation9], 4
      %s258 = int_to_ptr.vmem [resolvable:$true] %s257
      %260 = dma.vmem_to_hbm [thread:$0]  %s258, 32, %s6, [#allocation10]
    $region41: #{tpu_custom_call.1} parent=1 // pred_fallthru
      _
    // Predicated region
    $region42: #{tpu_custom_call.1} parent=1 // pred_check
      _
    $region43: #{tpu_custom_call.1} parent=1 // pred_check_branch
      %262 = sbr.rel (0) target = $region45
    $region44: #{tpu_custom_call.1} parent=1 // pred_region
      %263 = dma.done [#allocation4], 32
    $region45: #{tpu_custom_call.1} parent=1 // pred_fallthru
      _
    // Predicated region
    $region46: #{tpu_custom_call.1} parent=1 // pred_check
      _
    $region47: #{tpu_custom_call.1} parent=1 // pred_check_branch
      %265 = sbr.rel (0) target = $region49
    $region48: #{tpu_custom_call.1} parent=1 // pred_region
      %266 = dma.done [#allocation10], 32
    $region49: #{tpu_custom_call.1} parent=1 // pred_fallthru
      _
    %267 = vsyncpa [#allocation3], 1
    %268 = vsyncpa [#allocation6], 1
    %269 = vsyncpa [#allocation4], 1
    %270 = vsyncpa [#allocation10], 1

</llo_original>
